<compile_context>
chip_gen: v5e
topology: v5e:2x2
jax: 0.10.0
libtpu: 0.0.40
codegen_flags: <defaults>
</compile_context>

<pallas_src>
import jax
import jax.numpy as jnp
from jax.experimental import pallas as pl
from jax.experimental.pallas import tpu as pltpu

LAYERS = [2, 50, 3]
LANE = 128  # TPU lane width


def _round_up(n, m):
    return ((n + m - 1) // m) * m


def mlp_kernel(x_ref, w1_ref, b1_ref, w2_ref, b2_ref, o_ref):
    # x_ref : (tb, 2)
    # w1_ref: (2, 128)    hidden 50 zero-padded to 128
    # b1_ref: (1, 128)    padded lanes are 0
    # w2_ref: (128, 128)  rows 50.. and cols 3.. are zero
    # b2_ref: (1, 3)
    # o_ref : (tb, 3)     slim output block -> only real columns hit HBM
    out_f = o_ref.shape[-1]

    # Layer 1 on the MXU (K=2; Mosaic pads internally).  Bias + ReLU on VPU.
    h = jnp.dot(x_ref[...], w1_ref[...], preferred_element_type=jnp.float32)
    h = jnp.maximum(h + b1_ref[...], 0.0)          # (tb, 128); padded lanes stay 0

    # Layer 2 on the MXU; keep only the useful output columns for the store.
    y = jnp.dot(h, w2_ref[...], preferred_element_type=jnp.float32)   # (tb, 128)
    o_ref[...] = (y[:, :out_f] + b2_ref[...]).astype(o_ref.dtype)


def net_forward_pallas(x, w1, b1, w2, b2, *, block_b=8192, min_grid_steps=8):
    """Pallas forward.  x: (B, 2), w1: (2, 50), b1: (1, 50), w2: (50, 3), b2: (1, 3)."""
    B, in_f = x.shape
    hidden = w1.shape[1]
    out_f = w2.shape[1]
    dtype = x.dtype

    hid_p = _round_up(hidden, LANE)   # 128

    # Pad only the (tiny) parameters once; x and the output keep their true
    # HBM shapes (no full-array pad copies, slim 8 B/row in, 12 B/row out).
    w1_p = jnp.zeros((in_f, hid_p), dtype).at[:, :hidden].set(w1.astype(dtype))
    b1_p = jnp.zeros((1, hid_p), dtype).at[:, :hidden].set(b1.reshape(1, -1).astype(dtype))
    w2_p = jnp.zeros((hid_p, LANE), dtype).at[:hidden, :out_f].set(w2.astype(dtype))
    b2_r = b2.reshape(1, -1).astype(dtype)

    # Batch tile: large enough to amortize the ~0.35us grid-step overhead, but
    # keep >= min_grid_steps steps so v7x's two cores each retain a pipelined
    # loop.  Last block may be ragged; no jnp.pad of x.
    tb = min(block_b, _round_up(pl.cdiv(B, min_grid_steps), 8))
    grid = (pl.cdiv(B, tb),)

    return pl.pallas_call(
        mlp_kernel,
        out_shape=jax.ShapeDtypeStruct((B, out_f), dtype),
        grid_spec=pltpu.PrefetchScalarGridSpec(
            num_scalar_prefetch=0,
            grid=grid,
            in_specs=[
                pl.BlockSpec((tb, in_f), lambda i: (i, 0)),      # x: tiled over batch
                pl.BlockSpec((in_f, hid_p), lambda i: (0, 0)),   # w1: VMEM-resident
                pl.BlockSpec((1, hid_p), lambda i: (0, 0)),      # b1
                pl.BlockSpec((hid_p, LANE), lambda i: (0, 0)),   # w2
                pl.BlockSpec((1, out_f), lambda i: (0, 0)),      # b2 (unpadded)
            ],
            out_specs=pl.BlockSpec((tb, out_f), lambda i: (i, 0)),
        ),
        compiler_params=pltpu.CompilerParams(
            dimension_semantics=("parallel",),     # shard batch over v7x's 2 TCs
            vmem_limit_bytes=48 * 1024 * 1024,     # > v5e's 16MiB default, < v7x's 64MiB
        ),
    )(x, w1_p, b1_p, w2_p, b2_r)
    # TODO(synk): optional lane-dense repack of x ((B,2)->(B/64,128)) would let
    # tb grow further on v7x, but is only worth it if step overhead remains.


def reference_forward(x, params):
    """Pure-JAX reference mirroring the PyTorch module exactly (full f32)."""
    L = len(params)
    for l, (w, b) in enumerate(params):
        x = jnp.dot(x, w, precision=jax.lax.Precision.HIGHEST) + b
        if l < L - 1:
            x = jnp.maximum(x, 0.0)
    return x


def net_forward(x, w1, b1, w2, b2, *, block_b=8192, min_pallas_batch=512):
    """Tiny batches -> plain XLA fusion; larger batches -> Pallas kernel."""
    if x.shape[0] < min_pallas_batch:
        return reference_forward(x, [(w1, b1), (w2, b2)])
    return net_forward_pallas(x, w1, b1, w2, b2, block_b=block_b)


def init_params(key, layers):
    """PyTorch-style nn.Linear init: U(-1/sqrt(fan_in), 1/sqrt(fan_in)).
    Weights stored as (in_features, out_features) so the forward is x @ W."""
    params = []
    for fan_in, fan_out in zip(layers, layers[1:]):
        key, kw, kb = jax.random.split(key, 3)
        bound = 1.0 / jnp.sqrt(jnp.float32(fan_in))
        w = jax.random.uniform(kw, (fan_in, fan_out), jnp.float32, -bound, bound)
        b = jax.random.uniform(kb, (1, fan_out), jnp.float32, -bound, bound)
        params.append((w, b))
    return params


if __name__ == "__main__":
    key = jax.random.PRNGKey(0)
    kx, kx2, kp = jax.random.split(key, 3)

    (w1, b1), (w2, b2) = init_params(kp, LAYERS)

    # 1) Pallas kernel directly at a non-tile-aligned batch (exercises the
    #    ragged last block: 1000 rows, tb=128, grid=8 covering 1024 rows).
    batch = 1000
    x = jax.random.normal(kx, (batch, LAYERS[0]), dtype=jnp.float32)
    out = jax.block_until_ready(net_forward_pallas(x, w1, b1, w2, b2))
    ref = reference_forward(x, [(w1, b1), (w2, b2)])
    assert out.shape == (batch, LAYERS[-1])
    assert jnp.allclose(out, ref, atol=1e-4, rtol=1e-4), float(jnp.abs(out - ref).max())

    # 2) Tiny-batch path through the dispatcher (plain XLA fusion).
    x_small = jax.random.normal(kx2, (8, LAYERS[0]), dtype=jnp.float32)
    out_small = jax.block_until_ready(net_forward(x_small, w1, b1, w2, b2))
    ref_small = reference_forward(x_small, [(w1, b1), (w2, b2)])
    assert out_small.shape == (8, LAYERS[-1])
    assert jnp.allclose(out_small, ref_small, atol=1e-5, rtol=1e-5)

    print("KERNEL_OK")
</pallas_src>

<mosaic_0001>
module attributes {stable_mosaic.version = 11 : i64} {
  func.func @mlp_kernel(%arg0: i32, %arg1: memref<128x2xf32, #tpu.memory_space<vmem>>, %arg2: memref<2x128xf32, #tpu.memory_space<vmem>>, %arg3: memref<1x128xf32, #tpu.memory_space<vmem>>, %arg4: memref<128x128xf32, #tpu.memory_space<vmem>>, %arg5: memref<1x3xf32, #tpu.memory_space<vmem>>, %arg6: memref<128x3xf32, #tpu.memory_space<vmem>>) attributes {dimension_semantics = [#tpu.dimension_semantics<parallel>], iteration_bounds = array<i64: 8>, scalar_prefetch = 0 : i64, scratch_operands = 0 : i64, tpu.core_type = #tpu.core_type<tc>, window_params = [{transform_indices = @transform_0, window_bounds = array<i64: 128, 2>}, {pipeline_mode = #tpu.pipeline_mode<synchronous>, transform_indices = @transform_1, window_bounds = array<i64: 2, 128>}, {pipeline_mode = #tpu.pipeline_mode<synchronous>, transform_indices = @transform_2, window_bounds = array<i64: 1, 128>}, {pipeline_mode = #tpu.pipeline_mode<synchronous>, transform_indices = @transform_3, window_bounds = array<i64: 128, 128>}, {pipeline_mode = #tpu.pipeline_mode<synchronous>, transform_indices = @transform_4, window_bounds = array<i64: 1, 3>}, {transform_indices = @transform_5, window_bounds = array<i64: 128, 3>}]} {
    %c0 = arith.constant 0 : index
    %c0_0 = arith.constant 0 : index
    %0 = vector.load %arg1[%c0, %c0_0] : memref<128x2xf32, #tpu.memory_space<vmem>>, vector<128x2xf32>
    %c0_1 = arith.constant 0 : index
    %c0_2 = arith.constant 0 : index
    %1 = vector.load %arg2[%c0_1, %c0_2] : memref<2x128xf32, #tpu.memory_space<vmem>>, vector<2x128xf32>
    %cst = arith.constant dense<0.000000e+00> : vector<128x128xf32>
    %2 = tpu.matmul %0, %1, %cst {dimension_numbers = #tpu.dot_dimension_numbers<[1], [0], [0], [1], [0, 0, 1, 1], [], []>} : vector<128x2xf32>, vector<2x128xf32>, vector<128x128xf32> -> vector<128x128xf32>
    %c0_3 = arith.constant 0 : index
    %c0_4 = arith.constant 0 : index
    %3 = vector.load %arg3[%c0_3, %c0_4] : memref<1x128xf32, #tpu.memory_space<vmem>>, vector<1x128xf32>
    %4 = vector.broadcast %3 : vector<1x128xf32> to vector<128x128xf32>
    %5 = arith.addf %2, %4 : vector<128x128xf32>
    %cst_5 = arith.constant 0.000000e+00 : f32
    %6 = vector.broadcast %cst_5 : f32 to vector<128x128xf32>
    %7 = arith.maximumf %5, %6 : vector<128x128xf32>
    %c0_6 = arith.constant 0 : index
    %c0_7 = arith.constant 0 : index
    %8 = vector.load %arg4[%c0_6, %c0_7] : memref<128x128xf32, #tpu.memory_space<vmem>>, vector<128x128xf32>
    %cst_8 = arith.constant dense<0.000000e+00> : vector<128x128xf32>
    %9 = tpu.matmul %7, %8, %cst_8 {dimension_numbers = #tpu.dot_dimension_numbers<[1], [0], [0], [1], [0, 0, 1, 1], [], []>} : vector<128x128xf32>, vector<128x128xf32>, vector<128x128xf32> -> vector<128x128xf32>
    %10 = vector.extract_strided_slice %9 {offsets = [0, 0], sizes = [128, 3], strides = [1, 1]} : vector<128x128xf32> to vector<128x3xf32>
    %c0_9 = arith.constant 0 : index
    %c0_10 = arith.constant 0 : index
    %11 = vector.load %arg5[%c0_9, %c0_10] : memref<1x3xf32, #tpu.memory_space<vmem>>, vector<1x3xf32>
    %12 = vector.broadcast %11 : vector<1x3xf32> to vector<128x3xf32>
    %13 = arith.addf %10, %12 : vector<128x3xf32>
    %c0_11 = arith.constant 0 : index
    %c0_12 = arith.constant 0 : index
    %14 = vector.load %arg6[%c0_11, %c0_12] : memref<128x3xf32, #tpu.memory_space<vmem>>, vector<128x3xf32>
    tpu.vector_store %arg6[%c0_11, %c0_12], %13 {strides = array<i32>} : memref<128x3xf32, #tpu.memory_space<vmem>>, vector<128x3xf32>,
    return
  }
  func.func @transform_0(%arg0: i32) -> (i32, i32) {
    %c0_i32 = arith.constant 0 : i32
    %c0_i32_0 = arith.constant 0 : i32
    return %arg0, %c0_i32 : i32, i32
  }
  func.func @transform_1(%arg0: i32) -> (i32, i32) {
    %c0_i32 = arith.constant 0 : i32
    %c0_i32_0 = arith.constant 0 : i32
    %c0_i32_1 = arith.constant 0 : i32
    return %c0_i32, %c0_i32_0 : i32, i32
  }
  func.func @transform_2(%arg0: i32) -> (i32, i32) {
    %c0_i32 = arith.constant 0 : i32
    %c0_i32_0 = arith.constant 0 : i32
    %c0_i32_1 = arith.constant 0 : i32
    return %c0_i32, %c0_i32_0 : i32, i32
  }
  func.func @transform_3(%arg0: i32) -> (i32, i32) {
    %c0_i32 = arith.constant 0 : i32
    %c0_i32_0 = arith.constant 0 : i32
    %c0_i32_1 = arith.constant 0 : i32
    return %c0_i32, %c0_i32_0 : i32, i32
  }
  func.func @transform_4(%arg0: i32) -> (i32, i32) {
    %c0_i32 = arith.constant 0 : i32
    %c0_i32_0 = arith.constant 0 : i32
    %c0_i32_1 = arith.constant 0 : i32
    return %c0_i32, %c0_i32_0 : i32, i32
  }
  func.func @transform_5(%arg0: i32) -> (i32, i32) {
    %c0_i32 = arith.constant 0 : i32
    %c0_i32_0 = arith.constant 0 : i32
    return %arg0, %c0_i32 : i32, i32
  }
}

</mosaic_0001>

<llo_original>
// kernel: tpu_custom_call.1
$region0: #{tpu_custom_call.1}
  #allocation0 [shape = 'u32[]', space=smem, size = 0x4, offset = 0x4, fixed_abs, tag = 'smem constant byte address 0x4 - core index']
  #allocation1 [shape = 'u32[72,128]{1,0:T(1,128)}', space=vmem, size = 0x9000, scoped, tag = 'internal scratch']
  %s0 = inlined_call_operand.vmem [shape: f32[1000,2], index: 0, kind: input, shape index: {}]
  %s1 = inlined_call_operand.vmem [shape: f32[2,128], index: 1, kind: input, shape index: {}]
  %s2 = inlined_call_operand.vmem [shape: f32[1,128], index: 2, kind: input, shape index: {}]
  %s3 = inlined_call_operand.vmem [shape: f32[128,128], index: 3, kind: input, shape index: {}]
  %s4 = inlined_call_operand.vmem [shape: f32[1,3], index: 4, kind: input, shape index: {}]
  %s5 = inlined_call_operand.vmem [shape: f32[1000,3], index: 5, kind: output, shape index: {}]
  %s6 = sld [smem:[#allocation0]]
  $region101: #{tpu_custom_call.1} parent=0
    _
  %s8 = ssub.s32 1, %s6
  %s9 = scalar_select 0, %s8, %s6
  $region1: #{tpu_custom_call.1} parent=0
    #allocation2 [shape = 'u8[131072]{0}', space=vmem, size = 0x20000, scoped, tag = 'output window, operand 0']
    loop: start=0, step=1, limit=10
    $region2: #{tpu_custom_call.1} parent=1 // loop_pre_header
      _
    $region3: #{tpu_custom_call.1} parent=1 // loop_header
      %s11 = sphi 0, %s15
      %p12 = scmp.ge.s32.totalorder %s11, 10
      %s21 = sphi 0, %s23
      %s24 = sphi 0, %s21
      %s25 = sphi 0, %s24
      %s41 = sphi 0, %s25
      %s45 = sphi 0, %s45
      %s47 = sphi 0, %s45
      %s48 = sphi 0, %s47
      %s62 = sphi 0, %s48
      %s66 = sphi 0, %s66
      %s68 = sphi 0, %s66
      %s69 = sphi 0, %s68
      %s83 = sphi 0, %s69
      %s87 = sphi 0, %s87
      %s89 = sphi 0, %s87
      %s90 = sphi 0, %s89
      %s104 = sphi 0, %s90
      %s108 = sphi 0, %s108
      %s110 = sphi 0, %s108
      %s111 = sphi 0, %s110
      %s125 = sphi 0, %s111
      %s131 = sphi 0, %s133
      %s134 = sphi 0, %s131
      %s135 = sphi 0, %s134
      %s151 = sphi 0, %s135
    $region4: #{tpu_custom_call.1} parent=1 // loop_header_branch
      %14 = sbr.rel (%p12) target = $region8
    $region5: #{tpu_custom_call.1} parent=1 // loop_body
      %s16 = ssub.s32 %s11, 1
      %s17 = ssub.s32 %s11, 2
      %s18 = sadd.s32 %s11, 1
      %s19 = ssub.s32 %s11, %s18
      %p20 = scmp.eq.s32.totalorder %s19, 0
      %s22 = sadd.s32 %s21, 1
      %s23 = scalar_select %p20, %s21, %s22
      %p26 = pneg %p20
      %p27 = scmp.eq.s32.totalorder %s11, 7
      %p28 = por %p26, %p27
      %p29 = scmp.ne.s32.totalorder %s21, %s24
      %p30 = scmp.eq.s32.totalorder %s11, 0
      %p31 = por %p29, %p30
      %p32 = scmp.ne.s32.totalorder %s21, %s24
      %p33 = scmp.eq.s32.totalorder %s16, 7
      %p34 = por %p32, %p33
      %p35 = scmp.ne.s32.totalorder %s24, %s25
      %p36 = scmp.eq.s32.totalorder %s16, 0
      %p37 = por %p35, %p36
      %p38 = scmp.ne.s32.totalorder %s24, %s25
      %p39 = scmp.eq.s32.totalorder %s17, 7
      %p40 = por %p38, %p39
      %p42 = scmp.ne.s32.totalorder %s25, %s41
      %p43 = scmp.eq.s32.totalorder %s17, 0
      %p44 = por %p42, %p43
      %s46 = sadd.s32 %s45, 1
      %p49 = scmp.eq.s32.totalorder %s11, 7
      %p50 = scmp.ne.s32.totalorder %s45, %s47
      %p51 = scmp.eq.s32.totalorder %s11, 0
      %p52 = por %p50, %p51
      %p53 = scmp.ne.s32.totalorder %s45, %s47
      %p54 = scmp.eq.s32.totalorder %s16, 7
      %p55 = por %p53, %p54
      %p56 = scmp.ne.s32.totalorder %s47, %s48
      %p57 = scmp.eq.s32.totalorder %s16, 0
      %p58 = por %p56, %p57
      %p59 = scmp.ne.s32.totalorder %s47, %s48
      %p60 = scmp.eq.s32.totalorder %s17, 7
      %p61 = por %p59, %p60
      %p63 = scmp.ne.s32.totalorder %s48, %s62
      %p64 = scmp.eq.s32.totalorder %s17, 0
      %p65 = por %p63, %p64
      %s67 = sadd.s32 %s66, 1
      %p70 = scmp.eq.s32.totalorder %s11, 7
      %p71 = scmp.ne.s32.totalorder %s66, %s68
      %p72 = scmp.eq.s32.totalorder %s11, 0
      %p73 = por %p71, %p72
      %p74 = scmp.ne.s32.totalorder %s66, %s68
      %p75 = scmp.eq.s32.totalorder %s16, 7
      %p76 = por %p74, %p75
      %p77 = scmp.ne.s32.totalorder %s68, %s69
      %p78 = scmp.eq.s32.totalorder %s16, 0
      %p79 = por %p77, %p78
      %p80 = scmp.ne.s32.totalorder %s68, %s69
      %p81 = scmp.eq.s32.totalorder %s17, 7
      %p82 = por %p80, %p81
      %p84 = scmp.ne.s32.totalorder %s69, %s83
      %p85 = scmp.eq.s32.totalorder %s17, 0
      %p86 = por %p84, %p85
      %s88 = sadd.s32 %s87, 1
      %p91 = scmp.eq.s32.totalorder %s11, 7
      %p92 = scmp.ne.s32.totalorder %s87, %s89
      %p93 = scmp.eq.s32.totalorder %s11, 0
      %p94 = por %p92, %p93
      %p95 = scmp.ne.s32.totalorder %s87, %s89
      %p96 = scmp.eq.s32.totalorder %s16, 7
      %p97 = por %p95, %p96
      %p98 = scmp.ne.s32.totalorder %s89, %s90
      %p99 = scmp.eq.s32.totalorder %s16, 0
      %p100 = por %p98, %p99
      %p101 = scmp.ne.s32.totalorder %s89, %s90
      %p102 = scmp.eq.s32.totalorder %s17, 7
      %p103 = por %p101, %p102
      %p105 = scmp.ne.s32.totalorder %s90, %s104
      %p106 = scmp.eq.s32.totalorder %s17, 0
      %p107 = por %p105, %p106
      %s109 = sadd.s32 %s108, 1
      %p112 = scmp.eq.s32.totalorder %s11, 7
      %p113 = scmp.ne.s32.totalorder %s108, %s110
      %p114 = scmp.eq.s32.totalorder %s11, 0
      %p115 = por %p113, %p114
      %p116 = scmp.ne.s32.totalorder %s108, %s110
      %p117 = scmp.eq.s32.totalorder %s16, 7
      %p118 = por %p116, %p117
      %p119 = scmp.ne.s32.totalorder %s110, %s111
      %p120 = scmp.eq.s32.totalorder %s16, 0
      %p121 = por %p119, %p120
      %p122 = scmp.ne.s32.totalorder %s110, %s111
      %p123 = scmp.eq.s32.totalorder %s17, 7
      %p124 = por %p122, %p123
      %p126 = scmp.ne.s32.totalorder %s111, %s125
      %p127 = scmp.eq.s32.totalorder %s17, 0
      %p128 = por %p126, %p127
      %s129 = ssub.s32 %s11, %s18
      %p130 = scmp.eq.s32.totalorder %s129, 0
      %s132 = sadd.s32 %s131, 1
      %s133 = scalar_select %p130, %s131, %s132
      %p136 = pneg %p130
      %p137 = scmp.eq.s32.totalorder %s11, 7
      %p138 = por %p136, %p137
      %p139 = scmp.ne.s32.totalorder %s131, %s134
      %p140 = scmp.eq.s32.totalorder %s11, 0
      %p141 = por %p139, %p140
      %p142 = scmp.ne.s32.totalorder %s131, %s134
      %p143 = scmp.eq.s32.totalorder %s16, 7
      %p144 = por %p142, %p143
      %p145 = scmp.ne.s32.totalorder %s134, %s135
      %p146 = scmp.eq.s32.totalorder %s16, 0
      %p147 = por %p145, %p146
      %p148 = scmp.ne.s32.totalorder %s134, %s135
      %p149 = scmp.eq.s32.totalorder %s17, 7
      %p150 = por %p148, %p149
      %p152 = scmp.ne.s32.totalorder %s135, %s151
      %p153 = scmp.eq.s32.totalorder %s17, 0
      %p154 = por %p152, %p153
      %p155 = scmp.le.s32.totalorder 1, %s11
      %p156 = scmp.lt.s32.totalorder %s11, 9
      %p157 = pnand %p155, %p156
      %p158 = pneg %p157
      // Predicated region
      $region9: #{tpu_custom_call.1} parent=5 // pred_check
        _
      $region10: #{tpu_custom_call.1} parent=5 // pred_check_branch
        %160 = sbr.rel (%p157) target = $region12
      $region11: #{tpu_custom_call.1} parent=5 // pred_region
        %s161 = ssub.s32 %s11, 1
        // Predicated region
        $region13: #{tpu_custom_call.1} parent=11 // pred_check
          %p162 = pneg %p58
        $region14: #{tpu_custom_call.1} parent=11 // pred_check_branch
          %164 = sbr.rel (%p162) target = $region16
        $region15: #{tpu_custom_call.1} parent=11 // pred_region
          _
        $region16: #{tpu_custom_call.1} parent=11 // pred_fallthru
          _
        // Predicated region
        $region17: #{tpu_custom_call.1} parent=11 // pred_check
          %p165 = pneg %p79
        $region18: #{tpu_custom_call.1} parent=11 // pred_check_branch
          %167 = sbr.rel (%p165) target = $region20
        $region19: #{tpu_custom_call.1} parent=11 // pred_region
          _
        $region20: #{tpu_custom_call.1} parent=11 // pred_fallthru
          _
        // Predicated region
        $region21: #{tpu_custom_call.1} parent=11 // pred_check
          %p168 = pneg %p100
        $region22: #{tpu_custom_call.1} parent=11 // pred_check_branch
          %170 = sbr.rel (%p168) target = $region24
        $region23: #{tpu_custom_call.1} parent=11 // pred_region
          _
        $region24: #{tpu_custom_call.1} parent=11 // pred_fallthru
          _
        // Predicated region
        $region25: #{tpu_custom_call.1} parent=11 // pred_check
          %p171 = pneg %p121
        $region26: #{tpu_custom_call.1} parent=11 // pred_check_branch
          %173 = sbr.rel (%p171) target = $region28
        $region27: #{tpu_custom_call.1} parent=11 // pred_region
          _
        $region28: #{tpu_custom_call.1} parent=11 // pred_fallthru
          _
      $region12: #{tpu_custom_call.1} parent=5 // pred_fallthru
        _
      %p174 = scmp.lt.s32.totalorder %s11, 8
      // Predicated region
      $region29: #{tpu_custom_call.1} parent=5 // pred_check
        %p175 = pneg %p174
      $region30: #{tpu_custom_call.1} parent=5 // pred_check_branch
        %177 = sbr.rel (%p175) target = $region32
      $region31: #{tpu_custom_call.1} parent=5 // pred_region
        // Predicated region
        $region33: #{tpu_custom_call.1} parent=31 // pred_check
          %p178 = pneg %p31
        $region34: #{tpu_custom_call.1} parent=31 // pred_check_branch
          %180 = sbr.rel (%p178) target = $region36
        $region35: #{tpu_custom_call.1} parent=31 // pred_region
          %s181 = smul.u32 16, %s11
          %s182 = ssub.s32 125, %s181
          %p183 = scmp.lt.s32.totalorder %s182, 16
          %s184 = scalar_select %p183, %s182, 16
          %s185 = smul.u32 8, %s184
          %p186 = scmp.lt.s32.totalorder %s181, 124
          %s187 = scalar_select %p186, %s181, 124
          %s188 = smul.addr %s187, 8
          %s189 = scalar_lea.vmem %s0, %s188
          %s190 = smul.u32 16, %s11
          %s191 = ssub.s32 125, %s190
          %p192 = scmp.lt.s32.totalorder %s191, 16
          %s193 = scalar_select %p192, %s191, 16
          %s194 = smul.u32 8, %s193
        $region36: #{tpu_custom_call.1} parent=31 // pred_fallthru
          _
      $region32: #{tpu_custom_call.1} parent=5 // pred_fallthru
        _
      %p195 = scmp.le.s32.totalorder 1, %s11
      %p196 = scmp.lt.s32.totalorder %s11, 9
      %p197 = pnand %p195, %p196
      %p198 = pneg %p197
      // Predicated region
      $region37: #{tpu_custom_call.1} parent=5 // pred_check
        _
      $region38: #{tpu_custom_call.1} parent=5 // pred_check_branch
        %200 = sbr.rel (%p197) target = $region40
      $region39: #{tpu_custom_call.1} parent=5 // pred_region
        %s201 = ssub.s32 %s11, 1
        %s202 = smul.u32 16, %s16
        %s203 = ssub.s32 125, %s202
        %p204 = scmp.lt.s32.totalorder %s203, 16
        %s205 = scalar_select %p204, %s203, 16
        %s206 = smul.u32 8, %s205
        %p207 = scmp.lt.s32.totalorder %s202, 124
        %s208 = scalar_select %p207, %s202, 124
        %s209 = smul.addr %s208, 8
        %s210 = scalar_lea.vmem %s0, %s209
        %p211 = pneg %p37
        %p212 = pneg %p34
        %p213 = pneg %p58
        %p214 = pneg %p55
        %p215 = pneg %p79
        %p216 = pneg %p76
        %p217 = pneg %p100
        %p218 = pneg %p97
        %p219 = pneg %p121
        %p220 = pneg %p118
        %p221 = pneg %p147
        %p222 = pneg %p144
        %s223 = sand.u32 %s134, 1
        %s224 = sand.u32 %s134, 1
        %s225 = smul.addr %s224, 128
        %s226 = scalar_lea.vmem [#allocation2], %s225
        %s227 = smul.u32 16, %s16
        %s228 = ssub.s32 125, %s227
        %p229 = scmp.lt.s32.totalorder %s228, 16
        %s230 = scalar_select %p229, %s228, 16
        %s231 = smul.u32 8, %s230
        %p232 = scmp.lt.s32.totalorder %s227, 124
        %s233 = scalar_select %p232, %s227, 124
        %s234 = smul.addr %s233, 8
        %s235 = scalar_lea.vmem %s0, %s234
        %s236 = smul.u32 16, %s16
        %s237 = ssub.s32 125, %s236
        %p238 = scmp.lt.s32.totalorder %s237, 16
        %s239 = scalar_select %p238, %s237, 16
        %s240 = smul.u32 8, %s239
        %s241 = smul.u32 16, %s16
        %s242 = ssub.s32 125, %s241
        %p243 = scmp.lt.s32.totalorder %s242, 16
        %s244 = scalar_select %p243, %s242, 16
        %s245 = smul.u32 8, %s244
        %v246 = vld [vmem:[%s235] sm:$0xff]
        %v247 = vld [vmem:[%s235 + $0x8] sm:$0xff]
        %v248 = vld [vmem:[%s235 + $0x10] sm:$0xff]
        %v249 = vld [vmem:[%s235 + $0x18] sm:$0xff]
        %v250 = vld [vmem:[%s235 + $0x20] sm:$0xff]
        %v251 = vld [vmem:[%s235 + $0x28] sm:$0xff]
        %v252 = vld [vmem:[%s235 + $0x30] sm:$0xff]
        %v253 = vld [vmem:[%s235 + $0x38] sm:$0xff]
        %v254 = vld [vmem:[%s235 + $0x40] sm:$0xff]
        %v255 = vld [vmem:[%s235 + $0x48] sm:$0xff]
        %v256 = vld [vmem:[%s235 + $0x50] sm:$0xff]
        %v257 = vld [vmem:[%s235 + $0x58] sm:$0xff]
        %v258 = vld [vmem:[%s235 + $0x60] sm:$0xff]
        %v259 = vld [vmem:[%s235 + $0x68] sm:$0xff]
        %v260 = vld [vmem:[%s235 + $0x70] sm:$0xff]
        %v261 = vld [vmem:[%s235 + $0x78] sm:$0xff]
        %v262 = vld [vmem:[%s1] sm:$0x3]
        %v263 = vld [vmem:[%s2] sm:$0x1]
        %v265 = vperm.slane %v263, 0
        %vm267 = vcmask 15360
        %v269 = vsel %vm267, %v246, 0
        %v272 = vsel %vm267, %v247, 0
        %v275 = vsel %vm267, %v248, 0
        %v278 = vsel %vm267, %v249, 0
        %v281 = vsel %vm267, %v250, 0
        %v284 = vsel %vm267, %v251, 0
        %v287 = vsel %vm267, %v252, 0
        %v290 = vsel %vm267, %v253, 0
        %v293 = vsel %vm267, %v254, 0
        %v296 = vsel %vm267, %v255, 0
        %v299 = vsel %vm267, %v256, 0
        %v302 = vsel %vm267, %v257, 0
        %v305 = vsel %vm267, %v258, 0
        %v308 = vsel %vm267, %v259, 0
        %v311 = vsel %vm267, %v260, 0
        %v314 = vsel %vm267, %v261, 0
        %vm316 = vcmask 1041408
        %v318 = vsel %vm316, %v262, 0
        %320 = vmatpush.msra.mxu0 0.0
        %321 = vmatpush.msra.mxu0 0.0
        %322 = vmatpush.msra.mxu0 0.0
        %323 = vmatpush.msra.mxu0 0.0
        %324 = vmatpush.msra.mxu0 0.0
        %325 = vmatpush.msra.mxu0 0.0
        %326 = vmatpush.msra.mxu0 0.0
        %327 = vmatpush.msra.mxu0 0.0
        %328 = vmatpush.msra.mxu0 0.0
        %329 = vmatpush.msra.mxu0 0.0
        %330 = vmatpush.msra.mxu0 0.0
        %331 = vmatpush.msra.mxu0 0.0
        %332 = vmatpush.msra.mxu0 0.0
        %333 = vmatpush.msra.mxu0 0.0
        %334 = vmatpush.msra.mxu0 0.0
        %335 = vmatpush.msra.mxu0 %v318
        %336 = vmatmul.f32.gmra.mxu0 %v269
        %v337 = vpop.f32.mrf.mxu0
        %v338 = vadd.f32 %v265, %v337
        %339 = vmatmul.f32.gmra.mxu0 %v272
        %v340 = vpop.f32.mrf.mxu0
        %v341 = vadd.f32 %v265, %v340
        %342 = vmatmul.f32.gmra.mxu0 %v275
        %v343 = vpop.f32.mrf.mxu0
        %v344 = vadd.f32 %v265, %v343
        %345 = vmatmul.f32.gmra.mxu0 %v278
        %v346 = vpop.f32.mrf.mxu0
        %v347 = vadd.f32 %v265, %v346
        %348 = vmatmul.f32.gmra.mxu0 %v281
        %v349 = vpop.f32.mrf.mxu0
        %v350 = vadd.f32 %v265, %v349
        %351 = vmatmul.f32.gmra.mxu0 %v284
        %v352 = vpop.f32.mrf.mxu0
        %v353 = vadd.f32 %v265, %v352
        %354 = vmatmul.f32.gmra.mxu0 %v287
        %v355 = vpop.f32.mrf.mxu0
        %v356 = vadd.f32 %v265, %v355
        %357 = vmatmul.f32.gmra.mxu0 %v290
        %v358 = vpop.f32.mrf.mxu0
        %v359 = vadd.f32 %v265, %v358
        %360 = vmatmul.f32.gmra.mxu0 %v293
        %v361 = vpop.f32.mrf.mxu0
        %v362 = vadd.f32 %v265, %v361
        %363 = vmatmul.f32.gmra.mxu0 %v296
        %v364 = vpop.f32.mrf.mxu0
        %v365 = vadd.f32 %v265, %v364
        %366 = vmatmul.f32.gmra.mxu0 %v299
        %v367 = vpop.f32.mrf.mxu0
        %v368 = vadd.f32 %v265, %v367
        %369 = vmatmul.f32.gmra.mxu0 %v302
        %v370 = vpop.f32.mrf.mxu0
        %v371 = vadd.f32 %v265, %v370
        %372 = vmatmul.f32.gmra.mxu0 %v305
        %v373 = vpop.f32.mrf.mxu0
        %v374 = vadd.f32 %v265, %v373
        %375 = vmatmul.f32.gmra.mxu0 %v308
        %v376 = vpop.f32.mrf.mxu0
        %v377 = vadd.f32 %v265, %v376
        %378 = vmatmul.f32.gmra.mxu0 %v311
        %v379 = vpop.f32.mrf.mxu0
        %v380 = vadd.f32 %v265, %v379
        %381 = vmatmul.f32.gmra.mxu0 %v314
        %v382 = vpop.f32.mrf.mxu0
        %v383 = vadd.f32 %v265, %v382
        %384 = vdwg.mxu0
        %v385 = vmax.f32 %v338, 0.0
        %v386 = vmax.f32 %v341, 0.0
        %v387 = vmax.f32 %v344, 0.0
        %v388 = vmax.f32 %v347, 0.0
        %v389 = vmax.f32 %v350, 0.0
        %v390 = vmax.f32 %v353, 0.0
        %v391 = vmax.f32 %v356, 0.0
        %v392 = vmax.f32 %v359, 0.0
        %v393 = vmax.f32 %v362, 0.0
        %v394 = vmax.f32 %v365, 0.0
        %v395 = vmax.f32 %v368, 0.0
        %v396 = vmax.f32 %v371, 0.0
        %v397 = vmax.f32 %v374, 0.0
        %v398 = vmax.f32 %v377, 0.0
        %v399 = vmax.f32 %v380, 0.0
        %v400 = vmax.f32 %v383, 0.0
        %v401 = vld [vmem:[%s3] sm:$0xff]
        %v402 = vld [vmem:[%s3 + $0x8] sm:$0xff]
        %v403 = vld [vmem:[%s3 + $0x10] sm:$0xff]
        %v404 = vld [vmem:[%s3 + $0x18] sm:$0xff]
        %v405 = vld [vmem:[%s3 + $0x20] sm:$0xff]
        %v406 = vld [vmem:[%s3 + $0x28] sm:$0xff]
        %v407 = vld [vmem:[%s3 + $0x30] sm:$0xff]
        %v408 = vld [vmem:[%s3 + $0x38] sm:$0xff]
        %v409 = vld [vmem:[%s3 + $0x40] sm:$0xff]
        %v410 = vld [vmem:[%s3 + $0x48] sm:$0xff]
        %v411 = vld [vmem:[%s3 + $0x50] sm:$0xff]
        %v412 = vld [vmem:[%s3 + $0x58] sm:$0xff]
        %v413 = vld [vmem:[%s3 + $0x60] sm:$0xff]
        %v414 = vld [vmem:[%s3 + $0x68] sm:$0xff]
        %v415 = vld [vmem:[%s3 + $0x70] sm:$0xff]
        %v416 = vld [vmem:[%s3 + $0x78] sm:$0xff]
        %417 = vmatpush.msra.mxu0 %v416
        %418 = vmatpush.msra.mxu0 %v415
        %419 = vmatpush.msra.mxu0 %v414
        %420 = vmatpush.msra.mxu0 %v413
        %421 = vmatpush.msra.mxu0 %v412
        %422 = vmatpush.msra.mxu0 %v411
        %423 = vmatpush.msra.mxu0 %v410
        %424 = vmatpush.msra.mxu0 %v409
        %425 = vmatpush.msra.mxu0 %v408
        %426 = vmatpush.msra.mxu0 %v407
        %427 = vmatpush.msra.mxu0 %v406
        %428 = vmatpush.msra.mxu0 %v405
        %429 = vmatpush.msra.mxu0 %v404
        %430 = vmatpush.msra.mxu0 %v403
        %431 = vmatpush.msra.mxu0 %v402
        %432 = vmatpush.msra.mxu0 %v401
        %433 = vmatmul.f32.gmra.mxu0 %v385
        %v434 = vpop.f32.mrf.mxu0
        %v435 = vadd.f32 0.0, %v434
        %436 = vmatmul.f32.gmra.mxu0 %v386
        %v437 = vpop.f32.mrf.mxu0
        %v438 = vadd.f32 0.0, %v437
        %439 = vmatmul.f32.gmra.mxu0 %v387
        %v440 = vpop.f32.mrf.mxu0
        %v441 = vadd.f32 0.0, %v440
        %442 = vmatmul.f32.gmra.mxu0 %v388
        %v443 = vpop.f32.mrf.mxu0
        %v444 = vadd.f32 0.0, %v443
        %445 = vmatmul.f32.gmra.mxu0 %v389
        %v446 = vpop.f32.mrf.mxu0
        %v447 = vadd.f32 0.0, %v446
        %448 = vmatmul.f32.gmra.mxu0 %v390
        %v449 = vpop.f32.mrf.mxu0
        %v450 = vadd.f32 0.0, %v449
        %451 = vmatmul.f32.gmra.mxu0 %v391
        %v452 = vpop.f32.mrf.mxu0
        %v453 = vadd.f32 0.0, %v452
        %454 = vmatmul.f32.gmra.mxu0 %v392
        %v455 = vpop.f32.mrf.mxu0
        %v456 = vadd.f32 0.0, %v455
        %457 = vmatmul.f32.gmra.mxu0 %v393
        %v458 = vpop.f32.mrf.mxu0
        %v459 = vadd.f32 0.0, %v458
        %460 = vmatmul.f32.gmra.mxu0 %v394
        %v461 = vpop.f32.mrf.mxu0
        %v462 = vadd.f32 0.0, %v461
        %463 = vmatmul.f32.gmra.mxu0 %v395
        %v464 = vpop.f32.mrf.mxu0
        %v465 = vadd.f32 0.0, %v464
        %466 = vmatmul.f32.gmra.mxu0 %v396
        %v467 = vpop.f32.mrf.mxu0
        %v468 = vadd.f32 0.0, %v467
        %469 = vmatmul.f32.gmra.mxu0 %v397
        %v470 = vpop.f32.mrf.mxu0
        %v471 = vadd.f32 0.0, %v470
        %472 = vmatmul.f32.gmra.mxu0 %v398
        %v473 = vpop.f32.mrf.mxu0
        %v474 = vadd.f32 0.0, %v473
        %475 = vmatmul.f32.gmra.mxu0 %v399
        %v476 = vpop.f32.mrf.mxu0
        %v477 = vadd.f32 0.0, %v476
        %478 = vmatmul.f32.gmra.mxu0 %v400
        %v479 = vpop.f32.mrf.mxu0
        %v480 = vadd.f32 0.0, %v479
        %481 = vdwg.mxu0
        %v482 = vld [vmem:[%s4] sm:$0x1]
        %v484 = vperm.slane %v482, 0
        %v486 = vadd.f32 %v435, %v484
        %v487 = vadd.f32 %v438, %v484
        %v488 = vadd.f32 %v441, %v484
        %v489 = vadd.f32 %v444, %v484
        %v490 = vadd.f32 %v447, %v484
        %v491 = vadd.f32 %v450, %v484
        %v492 = vadd.f32 %v453, %v484
        %v493 = vadd.f32 %v456, %v484
        %v494 = vadd.f32 %v459, %v484
        %v495 = vadd.f32 %v462, %v484
        %v496 = vadd.f32 %v465, %v484
        %v497 = vadd.f32 %v468, %v484
        %v498 = vadd.f32 %v471, %v484
        %v499 = vadd.f32 %v474, %v484
        %v500 = vadd.f32 %v477, %v484
        %v501 = vadd.f32 %v480, %v484
        %vm502 = vcmask 23552
        %503 = vst.msk [vmem:[%s226] sm:$0xff] %vm502, %v486
        %504 = vst.msk [vmem:[%s226 + $0x8] sm:$0xff] %vm502, %v487
        %505 = vst.msk [vmem:[%s226 + $0x10] sm:$0xff] %vm502, %v488
        %506 = vst.msk [vmem:[%s226 + $0x18] sm:$0xff] %vm502, %v489
        %507 = vst.msk [vmem:[%s226 + $0x20] sm:$0xff] %vm502, %v490
        %508 = vst.msk [vmem:[%s226 + $0x28] sm:$0xff] %vm502, %v491
        %509 = vst.msk [vmem:[%s226 + $0x30] sm:$0xff] %vm502, %v492
        %510 = vst.msk [vmem:[%s226 + $0x38] sm:$0xff] %vm502, %v493
        %511 = vst.msk [vmem:[%s226 + $0x40] sm:$0xff] %vm502, %v494
        %512 = vst.msk [vmem:[%s226 + $0x48] sm:$0xff] %vm502, %v495
        %513 = vst.msk [vmem:[%s226 + $0x50] sm:$0xff] %vm502, %v496
        %514 = vst.msk [vmem:[%s226 + $0x58] sm:$0xff] %vm502, %v497
        %515 = vst.msk [vmem:[%s226 + $0x60] sm:$0xff] %vm502, %v498
        %516 = vst.msk [vmem:[%s226 + $0x68] sm:$0xff] %vm502, %v499
        %517 = vst.msk [vmem:[%s226 + $0x70] sm:$0xff] %vm502, %v500
        %518 = vst.msk [vmem:[%s226 + $0x78] sm:$0xff] %vm502, %v501
        %s519 = sand.u32 %s134, 1
        %s520 = sand.u32 %s134, 1
        %s521 = smul.addr %s520, 128
        %s522 = scalar_lea.vmem [#allocation2], %s521
        // Predicated region
        $region41: #{tpu_custom_call.1} parent=39 // pred_check
          %p523 = pneg %p144
        $region42: #{tpu_custom_call.1} parent=39 // pred_check_branch
          %525 = sbr.rel (%p523) target = $region44
        $region43: #{tpu_custom_call.1} parent=39 // pred_region
          %s526 = smul.u32 16, %s16
          %s527 = ssub.s32 125, %s526
          %p528 = scmp.lt.s32.totalorder %s527, 16
          %s529 = scalar_select %p528, %s527, 16
          %s530 = smul.u32 8, %s529
          %p531 = scmp.ne.s32.totalorder 0, %s530
          %s532 = smul.addr %s526, 8
          %s533 = scalar_lea.vmem %s5, %s532
          // Predicated region
          $region45: #{tpu_custom_call.1} parent=43 // pred_check
            %p534 = pneg %p531
          $region46: #{tpu_custom_call.1} parent=43 // pred_check_branch
            %536 = sbr.rel (%p534) target = $region48
          $region47: #{tpu_custom_call.1} parent=43 // pred_region
            // Predicated region
            $region49: #{tpu_custom_call.1} parent=47 // pred_check
              _
            $region50: #{tpu_custom_call.1} parent=47 // pred_check_branch
              %538 = sbr.rel (0) target = $region52
            $region51: #{tpu_custom_call.1} parent=47 // pred_region
              // Predicated region
              $region71: #{tpu_custom_call.1} parent=51 // pred_check
                _
              $region72: #{tpu_custom_call.1} parent=51 // pred_check_branch
                %618 = sbr.rel (0) target = $region74
              $region73: #{tpu_custom_call.1} parent=51 // pred_region
                %s619 = sshrl.u32 %s529, 4
                // While loop
                $region75: #{tpu_custom_call.1} parent=73 // loop_pre_header
                  _
                $region76: #{tpu_custom_call.1} parent=73 // loop_header
                  %s621 = sphi 0, %s623
                  %p622 = scmp.ge.s32.totalorder %s621, %s619
                  %s626 = sphi 0, %s663
                  %s627 = sphi %s522, %s666
                  %s628 = sphi %s533, %s667
                $region77: #{tpu_custom_call.1} parent=73 // loop_header_branch
                  %625 = sbr.rel (%p622) target = $region81
                $region78: #{tpu_custom_call.1} parent=73 // loop_body
                  %v629 = vld [vmem:[%s627] sm:$0xff]
                  %630 = vst [vmem:[%s628] sm:$0xff] %v629
                  %v631 = vld [vmem:[%s627 + $0x8] sm:$0xff]
                  %632 = vst [vmem:[%s628 + $0x8] sm:$0xff] %v631
                  %v633 = vld [vmem:[%s627 + $0x10] sm:$0xff]
                  %634 = vst [vmem:[%s628 + $0x10] sm:$0xff] %v633
                  %v635 = vld [vmem:[%s627 + $0x18] sm:$0xff]
                  %636 = vst [vmem:[%s628 + $0x18] sm:$0xff] %v635
                  %v637 = vld [vmem:[%s627 + $0x20] sm:$0xff]
                  %638 = vst [vmem:[%s628 + $0x20] sm:$0xff] %v637
                  %v639 = vld [vmem:[%s627 + $0x28] sm:$0xff]
                  %640 = vst [vmem:[%s628 + $0x28] sm:$0xff] %v639
                  %v641 = vld [vmem:[%s627 + $0x30] sm:$0xff]
                  %642 = vst [vmem:[%s628 + $0x30] sm:$0xff] %v641
                  %v643 = vld [vmem:[%s627 + $0x38] sm:$0xff]
                  %644 = vst [vmem:[%s628 + $0x38] sm:$0xff] %v643
                  %v645 = vld [vmem:[%s627 + $0x40] sm:$0xff]
                  %646 = vst [vmem:[%s628 + $0x40] sm:$0xff] %v645
                  %v647 = vld [vmem:[%s627 + $0x48] sm:$0xff]
                  %648 = vst [vmem:[%s628 + $0x48] sm:$0xff] %v647
                  %v649 = vld [vmem:[%s627 + $0x50] sm:$0xff]
                  %650 = vst [vmem:[%s628 + $0x50] sm:$0xff] %v649
                  %v651 = vld [vmem:[%s627 + $0x58] sm:$0xff]
                  %652 = vst [vmem:[%s628 + $0x58] sm:$0xff] %v651
                  %v653 = vld [vmem:[%s627 + $0x60] sm:$0xff]
                  %654 = vst [vmem:[%s628 + $0x60] sm:$0xff] %v653
                  %v655 = vld [vmem:[%s627 + $0x68] sm:$0xff]
                  %656 = vst [vmem:[%s628 + $0x68] sm:$0xff] %v655
                  %v657 = vld [vmem:[%s627 + $0x70] sm:$0xff]
                  %658 = vst [vmem:[%s628 + $0x70] sm:$0xff] %v657
                  %v659 = vld [vmem:[%s627 + $0x78] sm:$0xff]
                  %660 = vst [vmem:[%s628 + $0x78] sm:$0xff] %v659
                  %s661 = sadd.s32 1, %s626
                  %p662 = scmp.ge.s32.totalorder %s661, %s619
                  %s663 = scalar_select %p662, 0, %s661
                  %s664 = smul.u32 %s663, 128
                  %s665 = smul.u32 %s663, 128
                  %s666 = scalar_lea.vmem %s522, %s664 [#allocation2]
                  %s667 = scalar_lea.vmem %s533, %s665
                $region79: #{tpu_custom_call.1} parent=73 // loop_footer
                  %s623 = sadd.s32 %s621, 1
                $region80: #{tpu_custom_call.1} parent=73 // loop_footer_branch
                  %620 = sbr.rel target = $region76
                $region81: #{tpu_custom_call.1} parent=73 // loop_exit
                  _
                %s668 = sshrl.u32 %s529, 4
                %s669 = sand.u32 %s529, 15
                %s670 = smul.u32 %s668, 16
                %s671 = smul.u32 8, %s670
                %s672 = scalar_lea.vmem %s522, %s671 [#allocation2]
                %s673 = smul.u32 8, %s670
                %s674 = scalar_lea.vmem %s533, %s673
                // While loop
                $region82: #{tpu_custom_call.1} parent=73 // loop_pre_header
                  _
                $region83: #{tpu_custom_call.1} parent=73 // loop_header
                  %s676 = sphi 0, %s678
                  %p677 = scmp.ge.s32.totalorder %s676, %s669
                  %s681 = sphi 0, %s688
                  %s682 = sphi %s672, %s691
                  %s683 = sphi %s674, %s692
                $region84: #{tpu_custom_call.1} parent=73 // loop_header_branch
                  %680 = sbr.rel (%p677) target = $region88
                $region85: #{tpu_custom_call.1} parent=73 // loop_body
                  %v684 = vld [vmem:[%s682] sm:$0xff]
                  %685 = vst [vmem:[%s683] sm:$0xff] %v684
                  %s686 = sadd.s32 1, %s681
                  %p687 = scmp.ge.s32.totalorder %s686, %s669
                  %s688 = scalar_select %p687, 0, %s686
                  %s689 = smul.u32 %s688, 8
                  %s690 = smul.u32 %s688, 8
                  %s691 = scalar_lea.vmem %s672, %s689 [#allocation2]
                  %s692 = scalar_lea.vmem %s674, %s690
                $region86: #{tpu_custom_call.1} parent=73 // loop_footer
                  %s678 = sadd.s32 %s676, 1
                $region87: #{tpu_custom_call.1} parent=73 // loop_footer_branch
                  %675 = sbr.rel target = $region83
                $region88: #{tpu_custom_call.1} parent=73 // loop_exit
                  _
              $region74: #{tpu_custom_call.1} parent=51 // pred_fallthru
                _
              // Predicated region
              $region89: #{tpu_custom_call.1} parent=51 // pred_check
                _
              $region90: #{tpu_custom_call.1} parent=51 // pred_check_branch
                %694 = sbr.rel target = $region92
              $region91: #{tpu_custom_call.1} parent=51 // pred_region
                _
              $region92: #{tpu_custom_call.1} parent=51 // pred_fallthru
                _
            $region52: #{tpu_custom_call.1} parent=47 // pred_fallthru
              _
            // Predicated region
            $region53: #{tpu_custom_call.1} parent=47 // pred_check
              _
            $region54: #{tpu_custom_call.1} parent=47 // pred_check_branch
              %540 = sbr.rel target = $region56
            $region55: #{tpu_custom_call.1} parent=47 // pred_region
              %s542 = ssub.s32 256, 1
              %s543 = sshrl.u32 %s529, 4
              // While loop
              $region57: #{tpu_custom_call.1} parent=55 // loop_pre_header
                _
              $region58: #{tpu_custom_call.1} parent=55 // loop_header
                %s545 = sphi 0, %s547
                %p546 = scmp.ge.s32.totalorder %s545, %s543
                %s550 = sphi 0, %s587
                %s551 = sphi %s522, %s590
                %s552 = sphi %s533, %s591
              $region59: #{tpu_custom_call.1} parent=55 // loop_header_branch
                %549 = sbr.rel (%p546) target = $region63
              $region60: #{tpu_custom_call.1} parent=55 // loop_body
                %v553 = vld [vmem:[%s551] sm:%s542]
                %554 = vst [vmem:[%s552] sm:%s542] %v553
                %v555 = vld [vmem:[%s551 + $0x8] sm:%s542]
                %556 = vst [vmem:[%s552 + $0x8] sm:%s542] %v555
                %v557 = vld [vmem:[%s551 + $0x10] sm:%s542]
                %558 = vst [vmem:[%s552 + $0x10] sm:%s542] %v557
                %v559 = vld [vmem:[%s551 + $0x18] sm:%s542]
                %560 = vst [vmem:[%s552 + $0x18] sm:%s542] %v559
                %v561 = vld [vmem:[%s551 + $0x20] sm:%s542]
                %562 = vst [vmem:[%s552 + $0x20] sm:%s542] %v561
                %v563 = vld [vmem:[%s551 + $0x28] sm:%s542]
                %564 = vst [vmem:[%s552 + $0x28] sm:%s542] %v563
                %v565 = vld [vmem:[%s551 + $0x30] sm:%s542]
                %566 = vst [vmem:[%s552 + $0x30] sm:%s542] %v565
                %v567 = vld [vmem:[%s551 + $0x38] sm:%s542]
                %568 = vst [vmem:[%s552 + $0x38] sm:%s542] %v567
                %v569 = vld [vmem:[%s551 + $0x40] sm:%s542]
                %570 = vst [vmem:[%s552 + $0x40] sm:%s542] %v569
                %v571 = vld [vmem:[%s551 + $0x48] sm:%s542]
                %572 = vst [vmem:[%s552 + $0x48] sm:%s542] %v571
                %v573 = vld [vmem:[%s551 + $0x50] sm:%s542]
                %574 = vst [vmem:[%s552 + $0x50] sm:%s542] %v573
                %v575 = vld [vmem:[%s551 + $0x58] sm:%s542]
                %576 = vst [vmem:[%s552 + $0x58] sm:%s542] %v575
                %v577 = vld [vmem:[%s551 + $0x60] sm:%s542]
                %578 = vst [vmem:[%s552 + $0x60] sm:%s542] %v577
                %v579 = vld [vmem:[%s551 + $0x68] sm:%s542]
                %580 = vst [vmem:[%s552 + $0x68] sm:%s542] %v579
                %v581 = vld [vmem:[%s551 + $0x70] sm:%s542]
                %582 = vst [vmem:[%s552 + $0x70] sm:%s542] %v581
                %v583 = vld [vmem:[%s551 + $0x78] sm:%s542]
                %584 = vst [vmem:[%s552 + $0x78] sm:%s542] %v583
                %s585 = sadd.s32 1, %s550
                %p586 = scmp.ge.s32.totalorder %s585, %s543
                %s587 = scalar_select %p586, 0, %s585
                %s588 = smul.u32 %s587, 128
                %s589 = smul.u32 %s587, 128
                %s590 = scalar_lea.vmem %s522, %s588 [#allocation2]
                %s591 = scalar_lea.vmem %s533, %s589
              $region61: #{tpu_custom_call.1} parent=55 // loop_footer
                %s547 = sadd.s32 %s545, 1
              $region62: #{tpu_custom_call.1} parent=55 // loop_footer_branch
                %544 = sbr.rel target = $region58
              $region63: #{tpu_custom_call.1} parent=55 // loop_exit
                _
              %s592 = sshrl.u32 %s529, 4
              %s593 = sand.u32 %s529, 15
              %s594 = smul.u32 %s592, 16
              %s595 = smul.u32 8, %s594
              %s596 = scalar_lea.vmem %s522, %s595 [#allocation2]
              %s597 = smul.u32 8, %s594
              %s598 = scalar_lea.vmem %s533, %s597
              // While loop
              $region64: #{tpu_custom_call.1} parent=55 // loop_pre_header
                _
              $region65: #{tpu_custom_call.1} parent=55 // loop_header
                %s600 = sphi 0, %s602
                %p601 = scmp.ge.s32.totalorder %s600, %s593
                %s605 = sphi 0, %s612
                %s606 = sphi %s596, %s615
                %s607 = sphi %s598, %s616
              $region66: #{tpu_custom_call.1} parent=55 // loop_header_branch
                %604 = sbr.rel (%p601) target = $region70
              $region67: #{tpu_custom_call.1} parent=55 // loop_body
                %v608 = vld [vmem:[%s606] sm:%s542]
                %609 = vst [vmem:[%s607] sm:%s542] %v608
                %s610 = sadd.s32 1, %s605
                %p611 = scmp.ge.s32.totalorder %s610, %s593
                %s612 = scalar_select %p611, 0, %s610
                %s613 = smul.u32 %s612, 8
                %s614 = smul.u32 %s612, 8
                %s615 = scalar_lea.vmem %s596, %s613 [#allocation2]
                %s616 = scalar_lea.vmem %s598, %s614
              $region68: #{tpu_custom_call.1} parent=55 // loop_footer
                %s602 = sadd.s32 %s600, 1
              $region69: #{tpu_custom_call.1} parent=55 // loop_footer_branch
                %599 = sbr.rel target = $region65
              $region70: #{tpu_custom_call.1} parent=55 // loop_exit
                _
            $region56: #{tpu_custom_call.1} parent=47 // pred_fallthru
              _
          $region48: #{tpu_custom_call.1} parent=43 // pred_fallthru
            _
          %695 = vnop
        $region44: #{tpu_custom_call.1} parent=39 // pred_fallthru
          _
      $region40: #{tpu_custom_call.1} parent=5 // pred_fallthru
        _
      %p696 = scmp.le.s32.totalorder 2, %s11
      // Predicated region
      $region93: #{tpu_custom_call.1} parent=5 // pred_check
        %p697 = pneg %p696
      $region94: #{tpu_custom_call.1} parent=5 // pred_check_branch
        %699 = sbr.rel (%p697) target = $region96
      $region95: #{tpu_custom_call.1} parent=5 // pred_region
        %s700 = ssub.s32 %s11, 2
        // Predicated region
        $region97: #{tpu_custom_call.1} parent=95 // pred_check
          %p701 = pneg %p150
        $region98: #{tpu_custom_call.1} parent=95 // pred_check_branch
          %703 = sbr.rel (%p701) target = $region100
        $region99: #{tpu_custom_call.1} parent=95 // pred_region
          %s704 = sand.u32 %s135, 1
          %s705 = sand.u32 %s135, 1
          %s706 = smul.addr %s705, 128
          %s707 = scalar_lea.vmem [#allocation2], %s706
        $region100: #{tpu_custom_call.1} parent=95 // pred_fallthru
          _
      $region96: #{tpu_custom_call.1} parent=5 // pred_fallthru
        _
    $region6: #{tpu_custom_call.1} parent=1 // loop_footer
      %s15 = sadd.s32 1, %s11
    $region7: #{tpu_custom_call.1} parent=1 // loop_footer_branch
      %10 = sbr.rel target = $region3
    $region8: #{tpu_custom_call.1} parent=1 // loop_exit
      _

</llo_original>
